<compile_context>
chip_gen: v5e
topology: v5e:2x2
jax: 0.10.0
libtpu: 0.0.40
codegen_flags: <defaults>
</compile_context>

<pallas_src>
import functools

import jax
import jax.numpy as jnp
from jax.experimental import pallas as pl
from jax.experimental.pallas import tpu as pltpu

INPUT_SIZE = 5
HIDDEN_SIZE = 10
OUTPUT_SIZE = 5
BATCH_SIZE = 3
SEQ_LEN = 7
TARGET_LEN = 7


def _seq2seq_kernel(x_ref,            # (T, B, I)  time-major input
                    w_ih_e_t_ref,     # (I, H)     encoder input weight, pre-transposed
                    bias_e_ref,       # (1, H)     b_ih_e + b_hh_e
                    w_hh_e_t_ref,     # (H, H)     encoder recurrence weight, pre-transposed
                    w_dec_aug_ref,    # (H+1, H+1) decoder recurrence weight + bias row + keep-ones col
                    w_fc_aug_ref,     # (H+1, O)   fc weight (pre-transposed) + bias row
                    out_ref,          # (T_dec, B, O)
                    enc_h_ref,        # (B, H)
                    *, seq_len, target_len):
    b = x_ref.shape[1]
    h_dim = w_hh_e_t_ref.shape[0]

    # ---------------- encoder ----------------
    w_ih_e_t = w_ih_e_t_ref[...]
    bias_e = bias_e_ref[...]
    w_hh_e_t = w_hh_e_t_ref[...]

    # Input projection per timestep: leading-axis reads, independent of the
    # recurrence, so these matmuls are MXU filler off the serial chain.
    xs = [jnp.dot(x_ref[t], w_ih_e_t, preferred_element_type=jnp.float32) + bias_e
          for t in range(seq_len)]

    h = jnp.zeros((b, h_dim), jnp.float32)
    for t in range(seq_len):                       # static unroll (T small & static)
        h = jnp.tanh(xs[t] +
                     jnp.dot(h, w_hh_e_t, preferred_element_type=jnp.float32))
    enc_h_ref[...] = h                             # final encoder hidden, (B, H)

    # ---------------- decoder ----------------
    # Augmented hidden: last column is a constant 1 that carries the bias through
    # the matmul (w_dec_aug's last row holds b_ih_d + b_hh_d) and is regenerated
    # every step by tanh(30.0) == 1.0 (f32-exact), so no per-step bias add or
    # concat is needed on the serial chain.
    w_dec_aug = w_dec_aug_ref[...]                 # (H+1, H+1)
    w_fc_aug = w_fc_aug_ref[...]                   # (H+1, O)

    dh_aug = jnp.concatenate([h, jnp.ones((b, 1), jnp.float32)], axis=1)  # (B, H+1)
    for t in range(target_len):                    # static unroll
        dh_aug = jnp.tanh(jnp.dot(dh_aug, w_dec_aug,
                                  preferred_element_type=jnp.float32))
        # FC (weight+bias fused) is off the dependence chain; per-step
        # leading-axis store, no stack/reshape epilogue.
        out_ref[t] = jnp.dot(dh_aug, w_fc_aug, preferred_element_type=jnp.float32)


def seq2seq_forward(input_seq, params, target_len=TARGET_LEN):
    """input_seq: (B, T, I) float32. Returns (output_seq (B, target_len, O),
    encoder_hidden (1, B, H)) — same as PyTorch Seq2Seq.forward."""
    b, t, _ = input_seq.shape
    h = params["w_hh_e"].shape[0]
    o = params["w_fc"].shape[0]

    # Layout plumbing in the wrapper (free): time-major input, pre-transposed
    # weights, biases folded into augmented weight matrices.
    x_tbi = jnp.transpose(input_seq.astype(jnp.float32), (1, 0, 2))   # (T, B, I)

    bias_e = (params["b_ih_e"] + params["b_hh_e"]).reshape(1, h).astype(jnp.float32)
    bias_d = (params["b_ih_d"] + params["b_hh_d"]).astype(jnp.float32)

    # Decoder recurrence weight, augmented:
    #   [ W_hh_d.T | 0   ]
    #   [ bias_d   | 30. ]   (tanh(30) == 1 keeps the constant-1 column alive)
    w_dec_aug = jnp.zeros((h + 1, h + 1), jnp.float32)
    w_dec_aug = w_dec_aug.at[:h, :h].set(params["w_hh_d"].T.astype(jnp.float32))
    w_dec_aug = w_dec_aug.at[h, :h].set(bias_d)
    w_dec_aug = w_dec_aug.at[h, h].set(30.0)

    # FC weight with bias as the last row: (H+1, O)
    w_fc_aug = jnp.concatenate(
        [params["w_fc"].T.astype(jnp.float32),
         params["b_fc"].reshape(1, o).astype(jnp.float32)], axis=0)

    args = (
        x_tbi,
        params["w_ih_e"].T.astype(jnp.float32),    # (I, H)
        bias_e,                                    # (1, H)
        params["w_hh_e"].T.astype(jnp.float32),    # (H, H)
        w_dec_aug,                                 # (H+1, H+1)
        w_fc_aug,                                  # (H+1, O)
    )

    def full_vmem_spec(a):
        return pl.BlockSpec(a.shape, lambda: (0,) * a.ndim,
                            memory_space=pltpu.MemorySpace.VMEM)

    out_tbo, enc_h = pl.pallas_call(
        functools.partial(_seq2seq_kernel, seq_len=t, target_len=target_len),
        out_shape=(
            jax.ShapeDtypeStruct((target_len, b, o), jnp.float32),
            jax.ShapeDtypeStruct((b, h), jnp.float32),
        ),
        in_specs=[full_vmem_spec(a) for a in args],
        out_specs=(
            pl.BlockSpec((target_len, b, o), lambda: (0, 0, 0),
                         memory_space=pltpu.MemorySpace.VMEM),
            pl.BlockSpec((b, h), lambda: (0, 0),
                         memory_space=pltpu.MemorySpace.VMEM),
        ),
    )(*args)

    # (T_dec, B, O) -> (B, T_dec, O); PyTorch nn.RNN hidden is (num_layers=1, B, H).
    return jnp.transpose(out_tbo, (1, 0, 2)), enc_h[None, :, :]


def _init_params(key):
    """Deterministic init mimicking PyTorch's U(-1/sqrt(H), 1/sqrt(H))."""
    ks = jax.random.split(key, 11)
    bound = 1.0 / jnp.sqrt(jnp.float32(HIDDEN_SIZE))
    u = lambda k, shape: jax.random.uniform(k, shape, jnp.float32, -bound, bound)
    return {
        # encoder RNN
        "w_ih_e": u(ks[0], (HIDDEN_SIZE, INPUT_SIZE)),
        "w_hh_e": u(ks[1], (HIDDEN_SIZE, HIDDEN_SIZE)),
        "b_ih_e": u(ks[2], (HIDDEN_SIZE,)),
        "b_hh_e": u(ks[3], (HIDDEN_SIZE,)),
        # decoder RNN (input-to-hidden weight unused: decoder input is zeros)
        "w_ih_d": u(ks[4], (HIDDEN_SIZE, HIDDEN_SIZE)),
        "w_hh_d": u(ks[5], (HIDDEN_SIZE, HIDDEN_SIZE)),
        "b_ih_d": u(ks[6], (HIDDEN_SIZE,)),
        "b_hh_d": u(ks[7], (HIDDEN_SIZE,)),
        # decoder fc
        "w_fc": u(ks[8], (OUTPUT_SIZE, HIDDEN_SIZE)),
        "b_fc": u(ks[9], (OUTPUT_SIZE,)),
    }


def _reference_forward(x, p, target_len):
    """Pure-JAX reference mirroring the PyTorch module, for verification."""
    b = x.shape[0]
    h = jnp.zeros((b, HIDDEN_SIZE), jnp.float32)
    for t in range(x.shape[1]):
        h = jnp.tanh(x[:, t, :] @ p["w_ih_e"].T + p["b_ih_e"]
                     + h @ p["w_hh_e"].T + p["b_hh_e"])
    enc_h = h
    dh = enc_h
    outs = []
    zeros_in = jnp.zeros((b, HIDDEN_SIZE), jnp.float32)
    for _ in range(target_len):
        dh = jnp.tanh(zeros_in @ p["w_ih_d"].T + p["b_ih_d"]
                      + dh @ p["w_hh_d"].T + p["b_hh_d"])
        outs.append(dh @ p["w_fc"].T + p["b_fc"])
    return jnp.stack(outs, axis=1), enc_h[None]


if __name__ == "__main__":
    key = jax.random.PRNGKey(0)
    k_params, k_x = jax.random.split(key)
    params = _init_params(k_params)
    input_seq = jax.random.normal(k_x, (BATCH_SIZE, SEQ_LEN, INPUT_SIZE),
                                  jnp.float32)

    out_seq, enc_hidden = seq2seq_forward(input_seq, params, TARGET_LEN)
    out_seq = jax.block_until_ready(out_seq)
    enc_hidden = jax.block_until_ready(enc_hidden)

    ref_out, ref_h = _reference_forward(input_seq, params, TARGET_LEN)
    assert out_seq.shape == (BATCH_SIZE, TARGET_LEN, OUTPUT_SIZE)
    assert enc_hidden.shape == (1, BATCH_SIZE, HIDDEN_SIZE)
    assert jnp.allclose(out_seq, ref_out, atol=1e-5, rtol=1e-5)
    assert jnp.allclose(enc_hidden, ref_h, atol=1e-5, rtol=1e-5)

    print("KERNEL_OK")
</pallas_src>

<mosaic_0001>
module attributes {stable_mosaic.version = 11 : i64} {
  func.func @_seq2seq_kernel(%arg0: memref<7x3x5xf32, #tpu.memory_space<vmem>>, %arg1: memref<5x10xf32, #tpu.memory_space<vmem>>, %arg2: memref<1x10xf32, #tpu.memory_space<vmem>>, %arg3: memref<10x10xf32, #tpu.memory_space<vmem>>, %arg4: memref<11x11xf32, #tpu.memory_space<vmem>>, %arg5: memref<11x5xf32, #tpu.memory_space<vmem>>, %arg6: memref<7x3x5xf32, #tpu.memory_space<vmem>>, %arg7: memref<3x10xf32, #tpu.memory_space<vmem>>) attributes {dimension_semantics = [], scalar_prefetch = 0 : i64, scratch_operands = 0 : i64, tpu.core_type = #tpu.core_type<tc>} {
    %c0 = arith.constant 0 : index
    %c0_0 = arith.constant 0 : index
    %0 = vector.load %arg1[%c0, %c0_0] : memref<5x10xf32, #tpu.memory_space<vmem>>, vector<5x10xf32>
    %c0_1 = arith.constant 0 : index
    %c0_2 = arith.constant 0 : index
    %1 = vector.load %arg2[%c0_1, %c0_2] : memref<1x10xf32, #tpu.memory_space<vmem>>, vector<1x10xf32>
    %c0_3 = arith.constant 0 : index
    %c0_4 = arith.constant 0 : index
    %2 = vector.load %arg3[%c0_3, %c0_4] : memref<10x10xf32, #tpu.memory_space<vmem>>, vector<10x10xf32>
    %c0_5 = arith.constant 0 : index
    %c0_6 = arith.constant 0 : index
    %c0_7 = arith.constant 0 : index
    %3 = vector.load %arg0[%c0_5, %c0_6, %c0_7] : memref<7x3x5xf32, #tpu.memory_space<vmem>>, vector<1x3x5xf32>
    %4 = vector.shape_cast %3 : vector<1x3x5xf32> to vector<3x5xf32>
    %cst = arith.constant dense<0.000000e+00> : vector<3x10xf32>
    %5 = tpu.matmul %4, %0, %cst {dimension_numbers = #tpu.dot_dimension_numbers<[1], [0], [0], [1], [0, 0, 1, 1], [], []>} : vector<3x5xf32>, vector<5x10xf32>, vector<3x10xf32> -> vector<3x10xf32>
    %6 = vector.broadcast %1 : vector<1x10xf32> to vector<3x10xf32>
    %7 = arith.addf %5, %6 : vector<3x10xf32>
    %c1 = arith.constant 1 : index
    %c0_8 = arith.constant 0 : index
    %c0_9 = arith.constant 0 : index
    %8 = vector.load %arg0[%c1, %c0_8, %c0_9] : memref<7x3x5xf32, #tpu.memory_space<vmem>>, vector<1x3x5xf32>
    %9 = vector.shape_cast %8 : vector<1x3x5xf32> to vector<3x5xf32>
    %cst_10 = arith.constant dense<0.000000e+00> : vector<3x10xf32>
    %10 = tpu.matmul %9, %0, %cst_10 {dimension_numbers = #tpu.dot_dimension_numbers<[1], [0], [0], [1], [0, 0, 1, 1], [], []>} : vector<3x5xf32>, vector<5x10xf32>, vector<3x10xf32> -> vector<3x10xf32>
    %11 = vector.broadcast %1 : vector<1x10xf32> to vector<3x10xf32>
    %12 = arith.addf %10, %11 : vector<3x10xf32>
    %c2 = arith.constant 2 : index
    %c0_11 = arith.constant 0 : index
    %c0_12 = arith.constant 0 : index
    %13 = vector.load %arg0[%c2, %c0_11, %c0_12] : memref<7x3x5xf32, #tpu.memory_space<vmem>>, vector<1x3x5xf32>
    %14 = vector.shape_cast %13 : vector<1x3x5xf32> to vector<3x5xf32>
    %cst_13 = arith.constant dense<0.000000e+00> : vector<3x10xf32>
    %15 = tpu.matmul %14, %0, %cst_13 {dimension_numbers = #tpu.dot_dimension_numbers<[1], [0], [0], [1], [0, 0, 1, 1], [], []>} : vector<3x5xf32>, vector<5x10xf32>, vector<3x10xf32> -> vector<3x10xf32>
    %16 = vector.broadcast %1 : vector<1x10xf32> to vector<3x10xf32>
    %17 = arith.addf %15, %16 : vector<3x10xf32>
    %c3 = arith.constant 3 : index
    %c0_14 = arith.constant 0 : index
    %c0_15 = arith.constant 0 : index
    %18 = vector.load %arg0[%c3, %c0_14, %c0_15] : memref<7x3x5xf32, #tpu.memory_space<vmem>>, vector<1x3x5xf32>
    %19 = vector.shape_cast %18 : vector<1x3x5xf32> to vector<3x5xf32>
    %cst_16 = arith.constant dense<0.000000e+00> : vector<3x10xf32>
    %20 = tpu.matmul %19, %0, %cst_16 {dimension_numbers = #tpu.dot_dimension_numbers<[1], [0], [0], [1], [0, 0, 1, 1], [], []>} : vector<3x5xf32>, vector<5x10xf32>, vector<3x10xf32> -> vector<3x10xf32>
    %21 = vector.broadcast %1 : vector<1x10xf32> to vector<3x10xf32>
    %22 = arith.addf %20, %21 : vector<3x10xf32>
    %c4 = arith.constant 4 : index
    %c0_17 = arith.constant 0 : index
    %c0_18 = arith.constant 0 : index
    %23 = vector.load %arg0[%c4, %c0_17, %c0_18] : memref<7x3x5xf32, #tpu.memory_space<vmem>>, vector<1x3x5xf32>
    %24 = vector.shape_cast %23 : vector<1x3x5xf32> to vector<3x5xf32>
    %cst_19 = arith.constant dense<0.000000e+00> : vector<3x10xf32>
    %25 = tpu.matmul %24, %0, %cst_19 {dimension_numbers = #tpu.dot_dimension_numbers<[1], [0], [0], [1], [0, 0, 1, 1], [], []>} : vector<3x5xf32>, vector<5x10xf32>, vector<3x10xf32> -> vector<3x10xf32>
    %26 = vector.broadcast %1 : vector<1x10xf32> to vector<3x10xf32>
    %27 = arith.addf %25, %26 : vector<3x10xf32>
    %c5 = arith.constant 5 : index
    %c0_20 = arith.constant 0 : index
    %c0_21 = arith.constant 0 : index
    %28 = vector.load %arg0[%c5, %c0_20, %c0_21] : memref<7x3x5xf32, #tpu.memory_space<vmem>>, vector<1x3x5xf32>
    %29 = vector.shape_cast %28 : vector<1x3x5xf32> to vector<3x5xf32>
    %cst_22 = arith.constant dense<0.000000e+00> : vector<3x10xf32>
    %30 = tpu.matmul %29, %0, %cst_22 {dimension_numbers = #tpu.dot_dimension_numbers<[1], [0], [0], [1], [0, 0, 1, 1], [], []>} : vector<3x5xf32>, vector<5x10xf32>, vector<3x10xf32> -> vector<3x10xf32>
    %31 = vector.broadcast %1 : vector<1x10xf32> to vector<3x10xf32>
    %32 = arith.addf %30, %31 : vector<3x10xf32>
    %c6 = arith.constant 6 : index
    %c0_23 = arith.constant 0 : index
    %c0_24 = arith.constant 0 : index
    %33 = vector.load %arg0[%c6, %c0_23, %c0_24] : memref<7x3x5xf32, #tpu.memory_space<vmem>>, vector<1x3x5xf32>
    %34 = vector.shape_cast %33 : vector<1x3x5xf32> to vector<3x5xf32>
    %cst_25 = arith.constant dense<0.000000e+00> : vector<3x10xf32>
    %35 = tpu.matmul %34, %0, %cst_25 {dimension_numbers = #tpu.dot_dimension_numbers<[1], [0], [0], [1], [0, 0, 1, 1], [], []>} : vector<3x5xf32>, vector<5x10xf32>, vector<3x10xf32> -> vector<3x10xf32>
    %36 = vector.broadcast %1 : vector<1x10xf32> to vector<3x10xf32>
    %37 = arith.addf %35, %36 : vector<3x10xf32>
    %cst_26 = arith.constant 0.000000e+00 : f32
    %38 = vector.broadcast %cst_26 : f32 to vector<3x10xf32>
    %cst_27 = arith.constant dense<0.000000e+00> : vector<3x10xf32>
    %39 = tpu.matmul %38, %2, %cst_27 {dimension_numbers = #tpu.dot_dimension_numbers<[1], [0], [0], [1], [0, 0, 1, 1], [], []>} : vector<3x10xf32>, vector<10x10xf32>, vector<3x10xf32> -> vector<3x10xf32>
    %40 = arith.addf %7, %39 : vector<3x10xf32>
    %41 = math.tanh %40 : vector<3x10xf32>
    %cst_28 = arith.constant dense<0.000000e+00> : vector<3x10xf32>
    %42 = tpu.matmul %41, %2, %cst_28 {dimension_numbers = #tpu.dot_dimension_numbers<[1], [0], [0], [1], [0, 0, 1, 1], [], []>} : vector<3x10xf32>, vector<10x10xf32>, vector<3x10xf32> -> vector<3x10xf32>
    %43 = arith.addf %12, %42 : vector<3x10xf32>
    %44 = math.tanh %43 : vector<3x10xf32>
    %cst_29 = arith.constant dense<0.000000e+00> : vector<3x10xf32>
    %45 = tpu.matmul %44, %2, %cst_29 {dimension_numbers = #tpu.dot_dimension_numbers<[1], [0], [0], [1], [0, 0, 1, 1], [], []>} : vector<3x10xf32>, vector<10x10xf32>, vector<3x10xf32> -> vector<3x10xf32>
    %46 = arith.addf %17, %45 : vector<3x10xf32>
    %47 = math.tanh %46 : vector<3x10xf32>
    %cst_30 = arith.constant dense<0.000000e+00> : vector<3x10xf32>
    %48 = tpu.matmul %47, %2, %cst_30 {dimension_numbers = #tpu.dot_dimension_numbers<[1], [0], [0], [1], [0, 0, 1, 1], [], []>} : vector<3x10xf32>, vector<10x10xf32>, vector<3x10xf32> -> vector<3x10xf32>
    %49 = arith.addf %22, %48 : vector<3x10xf32>
    %50 = math.tanh %49 : vector<3x10xf32>
    %cst_31 = arith.constant dense<0.000000e+00> : vector<3x10xf32>
    %51 = tpu.matmul %50, %2, %cst_31 {dimension_numbers = #tpu.dot_dimension_numbers<[1], [0], [0], [1], [0, 0, 1, 1], [], []>} : vector<3x10xf32>, vector<10x10xf32>, vector<3x10xf32> -> vector<3x10xf32>
    %52 = arith.addf %27, %51 : vector<3x10xf32>
    %53 = math.tanh %52 : vector<3x10xf32>
    %cst_32 = arith.constant dense<0.000000e+00> : vector<3x10xf32>
    %54 = tpu.matmul %53, %2, %cst_32 {dimension_numbers = #tpu.dot_dimension_numbers<[1], [0], [0], [1], [0, 0, 1, 1], [], []>} : vector<3x10xf32>, vector<10x10xf32>, vector<3x10xf32> -> vector<3x10xf32>
    %55 = arith.addf %32, %54 : vector<3x10xf32>
    %56 = math.tanh %55 : vector<3x10xf32>
    %cst_33 = arith.constant dense<0.000000e+00> : vector<3x10xf32>
    %57 = tpu.matmul %56, %2, %cst_33 {dimension_numbers = #tpu.dot_dimension_numbers<[1], [0], [0], [1], [0, 0, 1, 1], [], []>} : vector<3x10xf32>, vector<10x10xf32>, vector<3x10xf32> -> vector<3x10xf32>
    %58 = arith.addf %37, %57 : vector<3x10xf32>
    %59 = math.tanh %58 : vector<3x10xf32>
    %c0_34 = arith.constant 0 : index
    %c0_35 = arith.constant 0 : index
    %60 = vector.load %arg7[%c0_34, %c0_35] : memref<3x10xf32, #tpu.memory_space<vmem>>, vector<3x10xf32>
    tpu.vector_store %arg7[%c0_34, %c0_35], %59 {strides = array<i32>} : memref<3x10xf32, #tpu.memory_space<vmem>>, vector<3x10xf32>,
    %c0_36 = arith.constant 0 : index
    %c0_37 = arith.constant 0 : index
    %61 = vector.load %arg4[%c0_36, %c0_37] : memref<11x11xf32, #tpu.memory_space<vmem>>, vector<11x11xf32>
    %c0_38 = arith.constant 0 : index
    %c0_39 = arith.constant 0 : index
    %62 = vector.load %arg5[%c0_38, %c0_39] : memref<11x5xf32, #tpu.memory_space<vmem>>, vector<11x5xf32>
    %cst_40 = arith.constant 1.000000e+00 : f32
    %63 = vector.broadcast %cst_40 : f32 to vector<3x1xf32>
    %64 = tpu.concatenate %59, %63 in 1 : vector<3x10xf32>, vector<3x1xf32> -> vector<3x11xf32>
    %cst_41 = arith.constant dense<0.000000e+00> : vector<3x11xf32>
    %65 = tpu.matmul %64, %61, %cst_41 {dimension_numbers = #tpu.dot_dimension_numbers<[1], [0], [0], [1], [0, 0, 1, 1], [], []>} : vector<3x11xf32>, vector<11x11xf32>, vector<3x11xf32> -> vector<3x11xf32>
    %66 = math.tanh %65 : vector<3x11xf32>
    %cst_42 = arith.constant dense<0.000000e+00> : vector<3x5xf32>
    %67 = tpu.matmul %66, %62, %cst_42 {dimension_numbers = #tpu.dot_dimension_numbers<[1], [0], [0], [1], [0, 0, 1, 1], [], []>} : vector<3x11xf32>, vector<11x5xf32>, vector<3x5xf32> -> vector<3x5xf32>
    %c0_43 = arith.constant 0 : index
    %c0_44 = arith.constant 0 : index
    %c0_45 = arith.constant 0 : index
    %68 = vector.load %arg6[%c0_43, %c0_44, %c0_45] : memref<7x3x5xf32, #tpu.memory_space<vmem>>, vector<1x3x5xf32>
    %69 = vector.shape_cast %68 : vector<1x3x5xf32> to vector<3x5xf32>
    %70 = vector.shape_cast %67 : vector<3x5xf32> to vector<1x3x5xf32>
    tpu.vector_store %arg6[%c0_43, %c0_44, %c0_45], %70 {strides = array<i32>} : memref<7x3x5xf32, #tpu.memory_space<vmem>>, vector<1x3x5xf32>,
    %cst_46 = arith.constant dense<0.000000e+00> : vector<3x11xf32>
    %71 = tpu.matmul %66, %61, %cst_46 {dimension_numbers = #tpu.dot_dimension_numbers<[1], [0], [0], [1], [0, 0, 1, 1], [], []>} : vector<3x11xf32>, vector<11x11xf32>, vector<3x11xf32> -> vector<3x11xf32>
    %72 = math.tanh %71 : vector<3x11xf32>
    %cst_47 = arith.constant dense<0.000000e+00> : vector<3x5xf32>
    %73 = tpu.matmul %72, %62, %cst_47 {dimension_numbers = #tpu.dot_dimension_numbers<[1], [0], [0], [1], [0, 0, 1, 1], [], []>} : vector<3x11xf32>, vector<11x5xf32>, vector<3x5xf32> -> vector<3x5xf32>
    %c1_48 = arith.constant 1 : index
    %c0_49 = arith.constant 0 : index
    %c0_50 = arith.constant 0 : index
    %74 = vector.load %arg6[%c1_48, %c0_49, %c0_50] : memref<7x3x5xf32, #tpu.memory_space<vmem>>, vector<1x3x5xf32>
    %75 = vector.shape_cast %74 : vector<1x3x5xf32> to vector<3x5xf32>
    %76 = vector.shape_cast %73 : vector<3x5xf32> to vector<1x3x5xf32>
    tpu.vector_store %arg6[%c1_48, %c0_49, %c0_50], %76 {strides = array<i32>} : memref<7x3x5xf32, #tpu.memory_space<vmem>>, vector<1x3x5xf32>,
    %cst_51 = arith.constant dense<0.000000e+00> : vector<3x11xf32>
    %77 = tpu.matmul %72, %61, %cst_51 {dimension_numbers = #tpu.dot_dimension_numbers<[1], [0], [0], [1], [0, 0, 1, 1], [], []>} : vector<3x11xf32>, vector<11x11xf32>, vector<3x11xf32> -> vector<3x11xf32>
    %78 = math.tanh %77 : vector<3x11xf32>
    %cst_52 = arith.constant dense<0.000000e+00> : vector<3x5xf32>
    %79 = tpu.matmul %78, %62, %cst_52 {dimension_numbers = #tpu.dot_dimension_numbers<[1], [0], [0], [1], [0, 0, 1, 1], [], []>} : vector<3x11xf32>, vector<11x5xf32>, vector<3x5xf32> -> vector<3x5xf32>
    %c2_53 = arith.constant 2 : index
    %c0_54 = arith.constant 0 : index
    %c0_55 = arith.constant 0 : index
    %80 = vector.load %arg6[%c2_53, %c0_54, %c0_55] : memref<7x3x5xf32, #tpu.memory_space<vmem>>, vector<1x3x5xf32>
    %81 = vector.shape_cast %80 : vector<1x3x5xf32> to vector<3x5xf32>
    %82 = vector.shape_cast %79 : vector<3x5xf32> to vector<1x3x5xf32>
    tpu.vector_store %arg6[%c2_53, %c0_54, %c0_55], %82 {strides = array<i32>} : memref<7x3x5xf32, #tpu.memory_space<vmem>>, vector<1x3x5xf32>,
    %cst_56 = arith.constant dense<0.000000e+00> : vector<3x11xf32>
    %83 = tpu.matmul %78, %61, %cst_56 {dimension_numbers = #tpu.dot_dimension_numbers<[1], [0], [0], [1], [0, 0, 1, 1], [], []>} : vector<3x11xf32>, vector<11x11xf32>, vector<3x11xf32> -> vector<3x11xf32>
    %84 = math.tanh %83 : vector<3x11xf32>
    %cst_57 = arith.constant dense<0.000000e+00> : vector<3x5xf32>
    %85 = tpu.matmul %84, %62, %cst_57 {dimension_numbers = #tpu.dot_dimension_numbers<[1], [0], [0], [1], [0, 0, 1, 1], [], []>} : vector<3x11xf32>, vector<11x5xf32>, vector<3x5xf32> -> vector<3x5xf32>
    %c3_58 = arith.constant 3 : index
    %c0_59 = arith.constant 0 : index
    %c0_60 = arith.constant 0 : index
    %86 = vector.load %arg6[%c3_58, %c0_59, %c0_60] : memref<7x3x5xf32, #tpu.memory_space<vmem>>, vector<1x3x5xf32>
    %87 = vector.shape_cast %86 : vector<1x3x5xf32> to vector<3x5xf32>
    %88 = vector.shape_cast %85 : vector<3x5xf32> to vector<1x3x5xf32>
    tpu.vector_store %arg6[%c3_58, %c0_59, %c0_60], %88 {strides = array<i32>} : memref<7x3x5xf32, #tpu.memory_space<vmem>>, vector<1x3x5xf32>,
    %cst_61 = arith.constant dense<0.000000e+00> : vector<3x11xf32>
    %89 = tpu.matmul %84, %61, %cst_61 {dimension_numbers = #tpu.dot_dimension_numbers<[1], [0], [0], [1], [0, 0, 1, 1], [], []>} : vector<3x11xf32>, vector<11x11xf32>, vector<3x11xf32> -> vector<3x11xf32>
    %90 = math.tanh %89 : vector<3x11xf32>
    %cst_62 = arith.constant dense<0.000000e+00> : vector<3x5xf32>
    %91 = tpu.matmul %90, %62, %cst_62 {dimension_numbers = #tpu.dot_dimension_numbers<[1], [0], [0], [1], [0, 0, 1, 1], [], []>} : vector<3x11xf32>, vector<11x5xf32>, vector<3x5xf32> -> vector<3x5xf32>
    %c4_63 = arith.constant 4 : index
    %c0_64 = arith.constant 0 : index
    %c0_65 = arith.constant 0 : index
    %92 = vector.load %arg6[%c4_63, %c0_64, %c0_65] : memref<7x3x5xf32, #tpu.memory_space<vmem>>, vector<1x3x5xf32>
    %93 = vector.shape_cast %92 : vector<1x3x5xf32> to vector<3x5xf32>
    %94 = vector.shape_cast %91 : vector<3x5xf32> to vector<1x3x5xf32>
    tpu.vector_store %arg6[%c4_63, %c0_64, %c0_65], %94 {strides = array<i32>} : memref<7x3x5xf32, #tpu.memory_space<vmem>>, vector<1x3x5xf32>,
    %cst_66 = arith.constant dense<0.000000e+00> : vector<3x11xf32>
    %95 = tpu.matmul %90, %61, %cst_66 {dimension_numbers = #tpu.dot_dimension_numbers<[1], [0], [0], [1], [0, 0, 1, 1], [], []>} : vector<3x11xf32>, vector<11x11xf32>, vector<3x11xf32> -> vector<3x11xf32>
    %96 = math.tanh %95 : vector<3x11xf32>
    %cst_67 = arith.constant dense<0.000000e+00> : vector<3x5xf32>
    %97 = tpu.matmul %96, %62, %cst_67 {dimension_numbers = #tpu.dot_dimension_numbers<[1], [0], [0], [1], [0, 0, 1, 1], [], []>} : vector<3x11xf32>, vector<11x5xf32>, vector<3x5xf32> -> vector<3x5xf32>
    %c5_68 = arith.constant 5 : index
    %c0_69 = arith.constant 0 : index
    %c0_70 = arith.constant 0 : index
    %98 = vector.load %arg6[%c5_68, %c0_69, %c0_70] : memref<7x3x5xf32, #tpu.memory_space<vmem>>, vector<1x3x5xf32>
    %99 = vector.shape_cast %98 : vector<1x3x5xf32> to vector<3x5xf32>
    %100 = vector.shape_cast %97 : vector<3x5xf32> to vector<1x3x5xf32>
    tpu.vector_store %arg6[%c5_68, %c0_69, %c0_70], %100 {strides = array<i32>} : memref<7x3x5xf32, #tpu.memory_space<vmem>>, vector<1x3x5xf32>,
    %cst_71 = arith.constant dense<0.000000e+00> : vector<3x11xf32>
    %101 = tpu.matmul %96, %61, %cst_71 {dimension_numbers = #tpu.dot_dimension_numbers<[1], [0], [0], [1], [0, 0, 1, 1], [], []>} : vector<3x11xf32>, vector<11x11xf32>, vector<3x11xf32> -> vector<3x11xf32>
    %102 = math.tanh %101 : vector<3x11xf32>
    %cst_72 = arith.constant dense<0.000000e+00> : vector<3x5xf32>
    %103 = tpu.matmul %102, %62, %cst_72 {dimension_numbers = #tpu.dot_dimension_numbers<[1], [0], [0], [1], [0, 0, 1, 1], [], []>} : vector<3x11xf32>, vector<11x5xf32>, vector<3x5xf32> -> vector<3x5xf32>
    %c6_73 = arith.constant 6 : index
    %c0_74 = arith.constant 0 : index
    %c0_75 = arith.constant 0 : index
    %104 = vector.load %arg6[%c6_73, %c0_74, %c0_75] : memref<7x3x5xf32, #tpu.memory_space<vmem>>, vector<1x3x5xf32>
    %105 = vector.shape_cast %104 : vector<1x3x5xf32> to vector<3x5xf32>
    %106 = vector.shape_cast %103 : vector<3x5xf32> to vector<1x3x5xf32>
    tpu.vector_store %arg6[%c6_73, %c0_74, %c0_75], %106 {strides = array<i32>} : memref<7x3x5xf32, #tpu.memory_space<vmem>>, vector<1x3x5xf32>,
    return
  }
}

</mosaic_0001>

<llo_original>
// kernel: tpu_custom_call.1
$region0: #{tpu_custom_call.1}
  #allocation0 [shape = 'u32[]', space=smem, size = 0x4, offset = 0x4, fixed_abs, tag = 'smem constant byte address 0x4 - core index']
  #allocation1 [shape = 'u32[72,128]{1,0:T(1,128)}', space=vmem, size = 0x9000, scoped, tag = 'internal scratch']
  %s0 = inlined_call_operand.vmem [shape: f32[7,3,5], index: 0, kind: input, shape index: {}]
  %s1 = inlined_call_operand.vmem [shape: f32[5,10], index: 1, kind: input, shape index: {}]
  %s2 = inlined_call_operand.vmem [shape: f32[1,10], index: 2, kind: input, shape index: {}]
  %s3 = inlined_call_operand.vmem [shape: f32[10,10], index: 3, kind: input, shape index: {}]
  %s4 = inlined_call_operand.vmem [shape: f32[11,11], index: 4, kind: input, shape index: {}]
  %s5 = inlined_call_operand.vmem [shape: f32[11,5], index: 5, kind: input, shape index: {}]
  %s6 = inlined_call_operand.vmem [shape: f32[7,3,5], index: 6, kind: output, shape index: {0}]
  %s7 = inlined_call_operand.hbm [shape: f32[3,10], index: 7, kind: output, shape index: {1}]
  %8 = xla_tuple %s6, %s7
  %s9 = sld [smem:[#allocation0]]
  $region42: #{tpu_custom_call.1} parent=0
    _
  %s11 = ssub.s32 1, %s9
  %s12 = scalar_select 0, %s11, %s9
  $region1: #{tpu_custom_call.1} parent=0
    #allocation2 [shape = 'u8[2048]{0}', space=vmem, size = 0x800, scoped, tag = 'output window, operand 1, single buffered']
    #allocation3 [shape = 's32[1]{0}', space=sflag, size = 0x4, scoped, tag = 'scoped memory for tpu_custom_call.1']
    %13 = vsyncpa [#allocation3], 0
    // Predicated region
    $region2: #{tpu_custom_call.1} parent=1 // pred_check
      _
    $region3: #{tpu_custom_call.1} parent=1 // pred_check_branch
      %15 = sbr.rel (0) target = $region5
    $region4: #{tpu_custom_call.1} parent=1 // pred_region
      _
    $region5: #{tpu_custom_call.1} parent=1 // pred_fallthru
      _
    // Predicated region
    $region6: #{tpu_custom_call.1} parent=1 // pred_check
      _
    $region7: #{tpu_custom_call.1} parent=1 // pred_check_branch
      %17 = sbr.rel (0) target = $region9
    $region8: #{tpu_custom_call.1} parent=1 // pred_region
      _
    $region9: #{tpu_custom_call.1} parent=1 // pred_fallthru
      _
    // Predicated region
    $region10: #{tpu_custom_call.1} parent=1 // pred_check
      _
    $region11: #{tpu_custom_call.1} parent=1 // pred_check_branch
      %19 = sbr.rel (0) target = $region13
    $region12: #{tpu_custom_call.1} parent=1 // pred_region
      _
    $region13: #{tpu_custom_call.1} parent=1 // pred_fallthru
      _
    // Predicated region
    $region14: #{tpu_custom_call.1} parent=1 // pred_check
      _
    $region15: #{tpu_custom_call.1} parent=1 // pred_check_branch
      %21 = sbr.rel (0) target = $region17
    $region16: #{tpu_custom_call.1} parent=1 // pred_region
      _
    $region17: #{tpu_custom_call.1} parent=1 // pred_fallthru
      _
    // Predicated region
    $region18: #{tpu_custom_call.1} parent=1 // pred_check
      _
    $region19: #{tpu_custom_call.1} parent=1 // pred_check_branch
      %23 = sbr.rel (0) target = $region21
    $region20: #{tpu_custom_call.1} parent=1 // pred_region
      _
    $region21: #{tpu_custom_call.1} parent=1 // pred_fallthru
      _
    // Predicated region
    $region22: #{tpu_custom_call.1} parent=1 // pred_check
      _
    $region23: #{tpu_custom_call.1} parent=1 // pred_check_branch
      %25 = sbr.rel (0) target = $region25
    $region24: #{tpu_custom_call.1} parent=1 // pred_region
      _
    $region25: #{tpu_custom_call.1} parent=1 // pred_fallthru
      _
    %v26 = vld [vmem:[%s1] sm:$0x1f]
    %v27 = vld [vmem:[%s2] sm:$0x1]
    %v28 = vld [vmem:[%s3] sm:$0xff]
    %v29 = vld [vmem:[%s3 + $0x8] sm:$0x3]
    %v30 = vld [vmem:[%s0] sm:$0x7]
    %v32 = vperm.slane %v27, 0
    %vm34 = vcmask 39936
    %v36 = vsel %vm34, %v30, 0
    %vm38 = vcmask 1044480
    %v40 = vsel %vm38, %v26, 0
    %42 = vmatpush.msra.mxu0 0.0
    %43 = vmatpush.msra.mxu0 0.0
    %44 = vmatpush.msra.mxu0 0.0
    %45 = vmatpush.msra.mxu0 0.0
    %46 = vmatpush.msra.mxu0 0.0
    %47 = vmatpush.msra.mxu0 0.0
    %48 = vmatpush.msra.mxu0 0.0
    %49 = vmatpush.msra.mxu0 0.0
    %50 = vmatpush.msra.mxu0 0.0
    %51 = vmatpush.msra.mxu0 0.0
    %52 = vmatpush.msra.mxu0 0.0
    %53 = vmatpush.msra.mxu0 0.0
    %54 = vmatpush.msra.mxu0 0.0
    %55 = vmatpush.msra.mxu0 0.0
    %56 = vmatpush.msra.mxu0 0.0
    %57 = vmatpush.msra.mxu0 %v40
    %58 = vmatmul.f32.gmra.mxu0 %v36
    %v59 = vpop.f32.mrf.mxu0
    %v60 = vadd.f32 %v32, %v59
    %61 = vdwg.mxu0
    %s62 = scalar_lea.vmem %s0, 4
    %v63 = vld [vmem:[%s62] sm:$0x7]
    %v65 = vsel %vm34, %v63, 0
    %67 = vmatpush.msra.mxu0 0.0
    %68 = vmatpush.msra.mxu0 0.0
    %69 = vmatpush.msra.mxu0 0.0
    %70 = vmatpush.msra.mxu0 0.0
    %71 = vmatpush.msra.mxu0 0.0
    %72 = vmatpush.msra.mxu0 0.0
    %73 = vmatpush.msra.mxu0 0.0
    %74 = vmatpush.msra.mxu0 0.0
    %75 = vmatpush.msra.mxu0 0.0
    %76 = vmatpush.msra.mxu0 0.0
    %77 = vmatpush.msra.mxu0 0.0
    %78 = vmatpush.msra.mxu0 0.0
    %79 = vmatpush.msra.mxu0 0.0
    %80 = vmatpush.msra.mxu0 0.0
    %81 = vmatpush.msra.mxu0 0.0
    %82 = vmatpush.msra.mxu0 %v40
    %83 = vmatmul.f32.gmra.mxu0 %v65
    %v84 = vpop.f32.mrf.mxu0
    %v85 = vadd.f32 %v32, %v84
    %86 = vdwg.mxu0
    %s87 = scalar_lea.vmem %s0, 8
    %v88 = vld [vmem:[%s87] sm:$0x7]
    %v90 = vsel %vm34, %v88, 0
    %92 = vmatpush.msra.mxu0 0.0
    %93 = vmatpush.msra.mxu0 0.0
    %94 = vmatpush.msra.mxu0 0.0
    %95 = vmatpush.msra.mxu0 0.0
    %96 = vmatpush.msra.mxu0 0.0
    %97 = vmatpush.msra.mxu0 0.0
    %98 = vmatpush.msra.mxu0 0.0
    %99 = vmatpush.msra.mxu0 0.0
    %100 = vmatpush.msra.mxu0 0.0
    %101 = vmatpush.msra.mxu0 0.0
    %102 = vmatpush.msra.mxu0 0.0
    %103 = vmatpush.msra.mxu0 0.0
    %104 = vmatpush.msra.mxu0 0.0
    %105 = vmatpush.msra.mxu0 0.0
    %106 = vmatpush.msra.mxu0 0.0
    %107 = vmatpush.msra.mxu0 %v40
    %108 = vmatmul.f32.gmra.mxu0 %v90
    %v109 = vpop.f32.mrf.mxu0
    %v110 = vadd.f32 %v32, %v109
    %111 = vdwg.mxu0
    %s112 = scalar_lea.vmem %s0, 12
    %v113 = vld [vmem:[%s112] sm:$0x7]
    %v115 = vsel %vm34, %v113, 0
    %117 = vmatpush.msra.mxu0 0.0
    %118 = vmatpush.msra.mxu0 0.0
    %119 = vmatpush.msra.mxu0 0.0
    %120 = vmatpush.msra.mxu0 0.0
    %121 = vmatpush.msra.mxu0 0.0
    %122 = vmatpush.msra.mxu0 0.0
    %123 = vmatpush.msra.mxu0 0.0
    %124 = vmatpush.msra.mxu0 0.0
    %125 = vmatpush.msra.mxu0 0.0
    %126 = vmatpush.msra.mxu0 0.0
    %127 = vmatpush.msra.mxu0 0.0
    %128 = vmatpush.msra.mxu0 0.0
    %129 = vmatpush.msra.mxu0 0.0
    %130 = vmatpush.msra.mxu0 0.0
    %131 = vmatpush.msra.mxu0 0.0
    %132 = vmatpush.msra.mxu0 %v40
    %133 = vmatmul.f32.gmra.mxu0 %v115
    %v134 = vpop.f32.mrf.mxu0
    %v135 = vadd.f32 %v32, %v134
    %136 = vdwg.mxu0
    %s137 = scalar_lea.vmem %s0, 16
    %v138 = vld [vmem:[%s137] sm:$0x7]
    %v140 = vsel %vm34, %v138, 0
    %142 = vmatpush.msra.mxu0 0.0
    %143 = vmatpush.msra.mxu0 0.0
    %144 = vmatpush.msra.mxu0 0.0
    %145 = vmatpush.msra.mxu0 0.0
    %146 = vmatpush.msra.mxu0 0.0
    %147 = vmatpush.msra.mxu0 0.0
    %148 = vmatpush.msra.mxu0 0.0
    %149 = vmatpush.msra.mxu0 0.0
    %150 = vmatpush.msra.mxu0 0.0
    %151 = vmatpush.msra.mxu0 0.0
    %152 = vmatpush.msra.mxu0 0.0
    %153 = vmatpush.msra.mxu0 0.0
    %154 = vmatpush.msra.mxu0 0.0
    %155 = vmatpush.msra.mxu0 0.0
    %156 = vmatpush.msra.mxu0 0.0
    %157 = vmatpush.msra.mxu0 %v40
    %158 = vmatmul.f32.gmra.mxu0 %v140
    %v159 = vpop.f32.mrf.mxu0
    %v160 = vadd.f32 %v32, %v159
    %161 = vdwg.mxu0
    %s162 = scalar_lea.vmem %s0, 20
    %v163 = vld [vmem:[%s162] sm:$0x7]
    %v165 = vsel %vm34, %v163, 0
    %167 = vmatpush.msra.mxu0 0.0
    %168 = vmatpush.msra.mxu0 0.0
    %169 = vmatpush.msra.mxu0 0.0
    %170 = vmatpush.msra.mxu0 0.0
    %171 = vmatpush.msra.mxu0 0.0
    %172 = vmatpush.msra.mxu0 0.0
    %173 = vmatpush.msra.mxu0 0.0
    %174 = vmatpush.msra.mxu0 0.0
    %175 = vmatpush.msra.mxu0 0.0
    %176 = vmatpush.msra.mxu0 0.0
    %177 = vmatpush.msra.mxu0 0.0
    %178 = vmatpush.msra.mxu0 0.0
    %179 = vmatpush.msra.mxu0 0.0
    %180 = vmatpush.msra.mxu0 0.0
    %181 = vmatpush.msra.mxu0 0.0
    %182 = vmatpush.msra.mxu0 %v40
    %183 = vmatmul.f32.gmra.mxu0 %v165
    %v184 = vpop.f32.mrf.mxu0
    %v185 = vadd.f32 %v32, %v184
    %186 = vdwg.mxu0
    %s187 = scalar_lea.vmem %s0, 24
    %v188 = vld [vmem:[%s187] sm:$0x7]
    %v190 = vsel %vm34, %v188, 0
    %192 = vmatpush.msra.mxu0 0.0
    %193 = vmatpush.msra.mxu0 0.0
    %194 = vmatpush.msra.mxu0 0.0
    %195 = vmatpush.msra.mxu0 0.0
    %196 = vmatpush.msra.mxu0 0.0
    %197 = vmatpush.msra.mxu0 0.0
    %198 = vmatpush.msra.mxu0 0.0
    %199 = vmatpush.msra.mxu0 0.0
    %200 = vmatpush.msra.mxu0 0.0
    %201 = vmatpush.msra.mxu0 0.0
    %202 = vmatpush.msra.mxu0 0.0
    %203 = vmatpush.msra.mxu0 0.0
    %204 = vmatpush.msra.mxu0 0.0
    %205 = vmatpush.msra.mxu0 0.0
    %206 = vmatpush.msra.mxu0 0.0
    %207 = vmatpush.msra.mxu0 %v40
    %208 = vmatmul.f32.gmra.mxu0 %v190
    %v209 = vpop.f32.mrf.mxu0
    %v210 = vadd.f32 %v32, %v209
    %211 = vdwg.mxu0
    %vm212 = vcmask 80896
    %v214 = vsel %vm212, 0.0, 0
    %vm216 = vcmask 1041408
    %v218 = vsel %vm216, %v29, 0
    %220 = vmatpush.msra.mxu0 0.0
    %221 = vmatpush.msra.mxu0 0.0
    %222 = vmatpush.msra.mxu0 0.0
    %223 = vmatpush.msra.mxu0 0.0
    %224 = vmatpush.msra.mxu0 0.0
    %225 = vmatpush.msra.mxu0 0.0
    %226 = vmatpush.msra.mxu0 0.0
    %227 = vmatpush.msra.mxu0 0.0
    %228 = vmatpush.msra.mxu0 0.0
    %229 = vmatpush.msra.mxu0 0.0
    %230 = vmatpush.msra.mxu0 0.0
    %231 = vmatpush.msra.mxu0 0.0
    %232 = vmatpush.msra.mxu0 0.0
    %233 = vmatpush.msra.mxu0 0.0
    %234 = vmatpush.msra.mxu0 %v218
    %235 = vmatpush.msra.mxu0 %v28
    %236 = vmatmul.f32.gmra.mxu0 %v214
    %v237 = vpop.f32.mrf.mxu0
    %v238 = vadd.f32 0.0, %v237
    %239 = vdwg.mxu0
    %v240 = vadd.f32 %v60, %v238
    %v241 = vtanh.pop %v240
    %v243 = vsel %vm212, %v241, 0
    %245 = vmatpush.msra.mxu0 0.0
    %246 = vmatpush.msra.mxu0 0.0
    %247 = vmatpush.msra.mxu0 0.0
    %248 = vmatpush.msra.mxu0 0.0
    %249 = vmatpush.msra.mxu0 0.0
    %250 = vmatpush.msra.mxu0 0.0
    %251 = vmatpush.msra.mxu0 0.0
    %252 = vmatpush.msra.mxu0 0.0
    %253 = vmatpush.msra.mxu0 0.0
    %254 = vmatpush.msra.mxu0 0.0
    %255 = vmatpush.msra.mxu0 0.0
    %256 = vmatpush.msra.mxu0 0.0
    %257 = vmatpush.msra.mxu0 0.0
    %258 = vmatpush.msra.mxu0 0.0
    %259 = vmatpush.msra.mxu0 %v218
    %260 = vmatpush.msra.mxu0 %v28
    %261 = vmatmul.f32.gmra.mxu0 %v243
    %v262 = vpop.f32.mrf.mxu0
    %v263 = vadd.f32 0.0, %v262
    %264 = vdwg.mxu0
    %v265 = vadd.f32 %v85, %v263
    %v266 = vtanh.pop %v265
    %v268 = vsel %vm212, %v266, 0
    %270 = vmatpush.msra.mxu0 0.0
    %271 = vmatpush.msra.mxu0 0.0
    %272 = vmatpush.msra.mxu0 0.0
    %273 = vmatpush.msra.mxu0 0.0
    %274 = vmatpush.msra.mxu0 0.0
    %275 = vmatpush.msra.mxu0 0.0
    %276 = vmatpush.msra.mxu0 0.0
    %277 = vmatpush.msra.mxu0 0.0
    %278 = vmatpush.msra.mxu0 0.0
    %279 = vmatpush.msra.mxu0 0.0
    %280 = vmatpush.msra.mxu0 0.0
    %281 = vmatpush.msra.mxu0 0.0
    %282 = vmatpush.msra.mxu0 0.0
    %283 = vmatpush.msra.mxu0 0.0
    %284 = vmatpush.msra.mxu0 %v218
    %285 = vmatpush.msra.mxu0 %v28
    %286 = vmatmul.f32.gmra.mxu0 %v268
    %v287 = vpop.f32.mrf.mxu0
    %v288 = vadd.f32 0.0, %v287
    %289 = vdwg.mxu0
    %v290 = vadd.f32 %v110, %v288
    %v291 = vtanh.pop %v290
    %v293 = vsel %vm212, %v291, 0
    %295 = vmatpush.msra.mxu0 0.0
    %296 = vmatpush.msra.mxu0 0.0
    %297 = vmatpush.msra.mxu0 0.0
    %298 = vmatpush.msra.mxu0 0.0
    %299 = vmatpush.msra.mxu0 0.0
    %300 = vmatpush.msra.mxu0 0.0
    %301 = vmatpush.msra.mxu0 0.0
    %302 = vmatpush.msra.mxu0 0.0
    %303 = vmatpush.msra.mxu0 0.0
    %304 = vmatpush.msra.mxu0 0.0
    %305 = vmatpush.msra.mxu0 0.0
    %306 = vmatpush.msra.mxu0 0.0
    %307 = vmatpush.msra.mxu0 0.0
    %308 = vmatpush.msra.mxu0 0.0
    %309 = vmatpush.msra.mxu0 %v218
    %310 = vmatpush.msra.mxu0 %v28
    %311 = vmatmul.f32.gmra.mxu0 %v293
    %v312 = vpop.f32.mrf.mxu0
    %v313 = vadd.f32 0.0, %v312
    %314 = vdwg.mxu0
    %v315 = vadd.f32 %v135, %v313
    %v316 = vtanh.pop %v315
    %v318 = vsel %vm212, %v316, 0
    %320 = vmatpush.msra.mxu0 0.0
    %321 = vmatpush.msra.mxu0 0.0
    %322 = vmatpush.msra.mxu0 0.0
    %323 = vmatpush.msra.mxu0 0.0
    %324 = vmatpush.msra.mxu0 0.0
    %325 = vmatpush.msra.mxu0 0.0
    %326 = vmatpush.msra.mxu0 0.0
    %327 = vmatpush.msra.mxu0 0.0
    %328 = vmatpush.msra.mxu0 0.0
    %329 = vmatpush.msra.mxu0 0.0
    %330 = vmatpush.msra.mxu0 0.0
    %331 = vmatpush.msra.mxu0 0.0
    %332 = vmatpush.msra.mxu0 0.0
    %333 = vmatpush.msra.mxu0 0.0
    %334 = vmatpush.msra.mxu0 %v218
    %335 = vmatpush.msra.mxu0 %v28
    %336 = vmatmul.f32.gmra.mxu0 %v318
    %v337 = vpop.f32.mrf.mxu0
    %v338 = vadd.f32 0.0, %v337
    %339 = vdwg.mxu0
    %v340 = vadd.f32 %v160, %v338
    %v341 = vtanh.pop %v340
    %v343 = vsel %vm212, %v341, 0
    %345 = vmatpush.msra.mxu0 0.0
    %346 = vmatpush.msra.mxu0 0.0
    %347 = vmatpush.msra.mxu0 0.0
    %348 = vmatpush.msra.mxu0 0.0
    %349 = vmatpush.msra.mxu0 0.0
    %350 = vmatpush.msra.mxu0 0.0
    %351 = vmatpush.msra.mxu0 0.0
    %352 = vmatpush.msra.mxu0 0.0
    %353 = vmatpush.msra.mxu0 0.0
    %354 = vmatpush.msra.mxu0 0.0
    %355 = vmatpush.msra.mxu0 0.0
    %356 = vmatpush.msra.mxu0 0.0
    %357 = vmatpush.msra.mxu0 0.0
    %358 = vmatpush.msra.mxu0 0.0
    %359 = vmatpush.msra.mxu0 %v218
    %360 = vmatpush.msra.mxu0 %v28
    %361 = vmatmul.f32.gmra.mxu0 %v343
    %v362 = vpop.f32.mrf.mxu0
    %v363 = vadd.f32 0.0, %v362
    %364 = vdwg.mxu0
    %v365 = vadd.f32 %v185, %v363
    %v366 = vtanh.pop %v365
    %v368 = vsel %vm212, %v366, 0
    %370 = vmatpush.msra.mxu0 0.0
    %371 = vmatpush.msra.mxu0 0.0
    %372 = vmatpush.msra.mxu0 0.0
    %373 = vmatpush.msra.mxu0 0.0
    %374 = vmatpush.msra.mxu0 0.0
    %375 = vmatpush.msra.mxu0 0.0
    %376 = vmatpush.msra.mxu0 0.0
    %377 = vmatpush.msra.mxu0 0.0
    %378 = vmatpush.msra.mxu0 0.0
    %379 = vmatpush.msra.mxu0 0.0
    %380 = vmatpush.msra.mxu0 0.0
    %381 = vmatpush.msra.mxu0 0.0
    %382 = vmatpush.msra.mxu0 0.0
    %383 = vmatpush.msra.mxu0 0.0
    %384 = vmatpush.msra.mxu0 %v218
    %385 = vmatpush.msra.mxu0 %v28
    %386 = vmatmul.f32.gmra.mxu0 %v368
    %v387 = vpop.f32.mrf.mxu0
    %v388 = vadd.f32 0.0, %v387
    %389 = vdwg.mxu0
    %v390 = vadd.f32 %v210, %v388
    %v391 = vtanh.pop %v390
    %vm392 = vcmask 75776
    %393 = vst.msk [vmem:[#allocation2] sm:$0x7] %vm392, %v391
    %v394 = vld [vmem:[%s4] sm:$0xff]
    %v395 = vld [vmem:[%s4 + $0x8] sm:$0x7]
    %v396 = vld [vmem:[%s5] sm:$0xff]
    %v397 = vld [vmem:[%s5 + $0x8] sm:$0x7]
    %v398 = vsel %vm212, %v391, 1.0
    %vm399 = vcmask 89088
    %v401 = vsel %vm399, %v398, 0
    %vm403 = vcmask 1042432
    %v405 = vsel %vm403, %v395, 0
    %407 = vmatpush.msra.mxu0 0.0
    %408 = vmatpush.msra.mxu0 0.0
    %409 = vmatpush.msra.mxu0 0.0
    %410 = vmatpush.msra.mxu0 0.0
    %411 = vmatpush.msra.mxu0 0.0
    %412 = vmatpush.msra.mxu0 0.0
    %413 = vmatpush.msra.mxu0 0.0
    %414 = vmatpush.msra.mxu0 0.0
    %415 = vmatpush.msra.mxu0 0.0
    %416 = vmatpush.msra.mxu0 0.0
    %417 = vmatpush.msra.mxu0 0.0
    %418 = vmatpush.msra.mxu0 0.0
    %419 = vmatpush.msra.mxu0 0.0
    %420 = vmatpush.msra.mxu0 0.0
    %421 = vmatpush.msra.mxu0 %v405
    %422 = vmatpush.msra.mxu0 %v394
    %423 = vmatmul.f32.gmra.mxu0 %v401
    %v424 = vpop.f32.mrf.mxu0
    %v425 = vadd.f32 0.0, %v424
    %426 = vdwg.mxu0
    %v427 = vtanh.pop %v425
    %v429 = vsel %vm399, %v427, 0
    %v432 = vsel %vm403, %v397, 0
    %434 = vmatpush.msra.mxu0 0.0
    %435 = vmatpush.msra.mxu0 0.0
    %436 = vmatpush.msra.mxu0 0.0
    %437 = vmatpush.msra.mxu0 0.0
    %438 = vmatpush.msra.mxu0 0.0
    %439 = vmatpush.msra.mxu0 0.0
    %440 = vmatpush.msra.mxu0 0.0
    %441 = vmatpush.msra.mxu0 0.0
    %442 = vmatpush.msra.mxu0 0.0
    %443 = vmatpush.msra.mxu0 0.0
    %444 = vmatpush.msra.mxu0 0.0
    %445 = vmatpush.msra.mxu0 0.0
    %446 = vmatpush.msra.mxu0 0.0
    %447 = vmatpush.msra.mxu0 0.0
    %448 = vmatpush.msra.mxu0 %v432
    %449 = vmatpush.msra.mxu0 %v396
    %450 = vmatmul.f32.gmra.mxu0 %v429
    %v451 = vpop.f32.mrf.mxu0
    %v452 = vadd.f32 0.0, %v451
    %453 = vdwg.mxu0
    %vm454 = vcmask 34816
    %455 = vst.msk [vmem:[%s6] sm:$0x7] %vm454, %v452
    %456 = vmatpush.msra.mxu0 0.0
    %457 = vmatpush.msra.mxu0 0.0
    %458 = vmatpush.msra.mxu0 0.0
    %459 = vmatpush.msra.mxu0 0.0
    %460 = vmatpush.msra.mxu0 0.0
    %461 = vmatpush.msra.mxu0 0.0
    %462 = vmatpush.msra.mxu0 0.0
    %463 = vmatpush.msra.mxu0 0.0
    %464 = vmatpush.msra.mxu0 0.0
    %465 = vmatpush.msra.mxu0 0.0
    %466 = vmatpush.msra.mxu0 0.0
    %467 = vmatpush.msra.mxu0 0.0
    %468 = vmatpush.msra.mxu0 0.0
    %469 = vmatpush.msra.mxu0 0.0
    %470 = vmatpush.msra.mxu0 %v405
    %471 = vmatpush.msra.mxu0 %v394
    %472 = vmatmul.f32.gmra.mxu0 %v429
    %v473 = vpop.f32.mrf.mxu0
    %v474 = vadd.f32 0.0, %v473
    %475 = vdwg.mxu0
    %v476 = vtanh.pop %v474
    %v478 = vsel %vm399, %v476, 0
    %480 = vmatpush.msra.mxu0 0.0
    %481 = vmatpush.msra.mxu0 0.0
    %482 = vmatpush.msra.mxu0 0.0
    %483 = vmatpush.msra.mxu0 0.0
    %484 = vmatpush.msra.mxu0 0.0
    %485 = vmatpush.msra.mxu0 0.0
    %486 = vmatpush.msra.mxu0 0.0
    %487 = vmatpush.msra.mxu0 0.0
    %488 = vmatpush.msra.mxu0 0.0
    %489 = vmatpush.msra.mxu0 0.0
    %490 = vmatpush.msra.mxu0 0.0
    %491 = vmatpush.msra.mxu0 0.0
    %492 = vmatpush.msra.mxu0 0.0
    %493 = vmatpush.msra.mxu0 0.0
    %494 = vmatpush.msra.mxu0 %v432
    %495 = vmatpush.msra.mxu0 %v396
    %496 = vmatmul.f32.gmra.mxu0 %v478
    %v497 = vpop.f32.mrf.mxu0
    %v498 = vadd.f32 0.0, %v497
    %499 = vdwg.mxu0
    %s500 = scalar_lea.vmem %s6, 4
    %501 = vst.msk [vmem:[%s500] sm:$0x7] %vm454, %v498
    %502 = vmatpush.msra.mxu0 0.0
    %503 = vmatpush.msra.mxu0 0.0
    %504 = vmatpush.msra.mxu0 0.0
    %505 = vmatpush.msra.mxu0 0.0
    %506 = vmatpush.msra.mxu0 0.0
    %507 = vmatpush.msra.mxu0 0.0
    %508 = vmatpush.msra.mxu0 0.0
    %509 = vmatpush.msra.mxu0 0.0
    %510 = vmatpush.msra.mxu0 0.0
    %511 = vmatpush.msra.mxu0 0.0
    %512 = vmatpush.msra.mxu0 0.0
    %513 = vmatpush.msra.mxu0 0.0
    %514 = vmatpush.msra.mxu0 0.0
    %515 = vmatpush.msra.mxu0 0.0
    %516 = vmatpush.msra.mxu0 %v405
    %517 = vmatpush.msra.mxu0 %v394
    %518 = vmatmul.f32.gmra.mxu0 %v478
    %v519 = vpop.f32.mrf.mxu0
    %v520 = vadd.f32 0.0, %v519
    %521 = vdwg.mxu0
    %v522 = vtanh.pop %v520
    %v524 = vsel %vm399, %v522, 0
    %526 = vmatpush.msra.mxu0 0.0
    %527 = vmatpush.msra.mxu0 0.0
    %528 = vmatpush.msra.mxu0 0.0
    %529 = vmatpush.msra.mxu0 0.0
    %530 = vmatpush.msra.mxu0 0.0
    %531 = vmatpush.msra.mxu0 0.0
    %532 = vmatpush.msra.mxu0 0.0
    %533 = vmatpush.msra.mxu0 0.0
    %534 = vmatpush.msra.mxu0 0.0
    %535 = vmatpush.msra.mxu0 0.0
    %536 = vmatpush.msra.mxu0 0.0
    %537 = vmatpush.msra.mxu0 0.0
    %538 = vmatpush.msra.mxu0 0.0
    %539 = vmatpush.msra.mxu0 0.0
    %540 = vmatpush.msra.mxu0 %v432
    %541 = vmatpush.msra.mxu0 %v396
    %542 = vmatmul.f32.gmra.mxu0 %v524
    %v543 = vpop.f32.mrf.mxu0
    %v544 = vadd.f32 0.0, %v543
    %545 = vdwg.mxu0
    %s546 = scalar_lea.vmem %s6, 8
    %547 = vst.msk [vmem:[%s546] sm:$0x7] %vm454, %v544
    %548 = vmatpush.msra.mxu0 0.0
    %549 = vmatpush.msra.mxu0 0.0
    %550 = vmatpush.msra.mxu0 0.0
    %551 = vmatpush.msra.mxu0 0.0
    %552 = vmatpush.msra.mxu0 0.0
    %553 = vmatpush.msra.mxu0 0.0
    %554 = vmatpush.msra.mxu0 0.0
    %555 = vmatpush.msra.mxu0 0.0
    %556 = vmatpush.msra.mxu0 0.0
    %557 = vmatpush.msra.mxu0 0.0
    %558 = vmatpush.msra.mxu0 0.0
    %559 = vmatpush.msra.mxu0 0.0
    %560 = vmatpush.msra.mxu0 0.0
    %561 = vmatpush.msra.mxu0 0.0
    %562 = vmatpush.msra.mxu0 %v405
    %563 = vmatpush.msra.mxu0 %v394
    %564 = vmatmul.f32.gmra.mxu0 %v524
    %v565 = vpop.f32.mrf.mxu0
    %v566 = vadd.f32 0.0, %v565
    %567 = vdwg.mxu0
    %v568 = vtanh.pop %v566
    %v570 = vsel %vm399, %v568, 0
    %572 = vmatpush.msra.mxu0 0.0
    %573 = vmatpush.msra.mxu0 0.0
    %574 = vmatpush.msra.mxu0 0.0
    %575 = vmatpush.msra.mxu0 0.0
    %576 = vmatpush.msra.mxu0 0.0
    %577 = vmatpush.msra.mxu0 0.0
    %578 = vmatpush.msra.mxu0 0.0
    %579 = vmatpush.msra.mxu0 0.0
    %580 = vmatpush.msra.mxu0 0.0
    %581 = vmatpush.msra.mxu0 0.0
    %582 = vmatpush.msra.mxu0 0.0
    %583 = vmatpush.msra.mxu0 0.0
    %584 = vmatpush.msra.mxu0 0.0
    %585 = vmatpush.msra.mxu0 0.0
    %586 = vmatpush.msra.mxu0 %v432
    %587 = vmatpush.msra.mxu0 %v396
    %588 = vmatmul.f32.gmra.mxu0 %v570
    %v589 = vpop.f32.mrf.mxu0
    %v590 = vadd.f32 0.0, %v589
    %591 = vdwg.mxu0
    %s592 = scalar_lea.vmem %s6, 12
    %593 = vst.msk [vmem:[%s592] sm:$0x7] %vm454, %v590
    %594 = vmatpush.msra.mxu0 0.0
    %595 = vmatpush.msra.mxu0 0.0
    %596 = vmatpush.msra.mxu0 0.0
    %597 = vmatpush.msra.mxu0 0.0
    %598 = vmatpush.msra.mxu0 0.0
    %599 = vmatpush.msra.mxu0 0.0
    %600 = vmatpush.msra.mxu0 0.0
    %601 = vmatpush.msra.mxu0 0.0
    %602 = vmatpush.msra.mxu0 0.0
    %603 = vmatpush.msra.mxu0 0.0
    %604 = vmatpush.msra.mxu0 0.0
    %605 = vmatpush.msra.mxu0 0.0
    %606 = vmatpush.msra.mxu0 0.0
    %607 = vmatpush.msra.mxu0 0.0
    %608 = vmatpush.msra.mxu0 %v405
    %609 = vmatpush.msra.mxu0 %v394
    %610 = vmatmul.f32.gmra.mxu0 %v570
    %v611 = vpop.f32.mrf.mxu0
    %v612 = vadd.f32 0.0, %v611
    %613 = vdwg.mxu0
    %v614 = vtanh.pop %v612
    %v616 = vsel %vm399, %v614, 0
    %618 = vmatpush.msra.mxu0 0.0
    %619 = vmatpush.msra.mxu0 0.0
    %620 = vmatpush.msra.mxu0 0.0
    %621 = vmatpush.msra.mxu0 0.0
    %622 = vmatpush.msra.mxu0 0.0
    %623 = vmatpush.msra.mxu0 0.0
    %624 = vmatpush.msra.mxu0 0.0
    %625 = vmatpush.msra.mxu0 0.0
    %626 = vmatpush.msra.mxu0 0.0
    %627 = vmatpush.msra.mxu0 0.0
    %628 = vmatpush.msra.mxu0 0.0
    %629 = vmatpush.msra.mxu0 0.0
    %630 = vmatpush.msra.mxu0 0.0
    %631 = vmatpush.msra.mxu0 0.0
    %632 = vmatpush.msra.mxu0 %v432
    %633 = vmatpush.msra.mxu0 %v396
    %634 = vmatmul.f32.gmra.mxu0 %v616
    %v635 = vpop.f32.mrf.mxu0
    %v636 = vadd.f32 0.0, %v635
    %637 = vdwg.mxu0
    %s638 = scalar_lea.vmem %s6, 16
    %639 = vst.msk [vmem:[%s638] sm:$0x7] %vm454, %v636
    %640 = vmatpush.msra.mxu0 0.0
    %641 = vmatpush.msra.mxu0 0.0
    %642 = vmatpush.msra.mxu0 0.0
    %643 = vmatpush.msra.mxu0 0.0
    %644 = vmatpush.msra.mxu0 0.0
    %645 = vmatpush.msra.mxu0 0.0
    %646 = vmatpush.msra.mxu0 0.0
    %647 = vmatpush.msra.mxu0 0.0
    %648 = vmatpush.msra.mxu0 0.0
    %649 = vmatpush.msra.mxu0 0.0
    %650 = vmatpush.msra.mxu0 0.0
    %651 = vmatpush.msra.mxu0 0.0
    %652 = vmatpush.msra.mxu0 0.0
    %653 = vmatpush.msra.mxu0 0.0
    %654 = vmatpush.msra.mxu0 %v405
    %655 = vmatpush.msra.mxu0 %v394
    %656 = vmatmul.f32.gmra.mxu0 %v616
    %v657 = vpop.f32.mrf.mxu0
    %v658 = vadd.f32 0.0, %v657
    %659 = vdwg.mxu0
    %v660 = vtanh.pop %v658
    %v662 = vsel %vm399, %v660, 0
    %664 = vmatpush.msra.mxu0 0.0
    %665 = vmatpush.msra.mxu0 0.0
    %666 = vmatpush.msra.mxu0 0.0
    %667 = vmatpush.msra.mxu0 0.0
    %668 = vmatpush.msra.mxu0 0.0
    %669 = vmatpush.msra.mxu0 0.0
    %670 = vmatpush.msra.mxu0 0.0
    %671 = vmatpush.msra.mxu0 0.0
    %672 = vmatpush.msra.mxu0 0.0
    %673 = vmatpush.msra.mxu0 0.0
    %674 = vmatpush.msra.mxu0 0.0
    %675 = vmatpush.msra.mxu0 0.0
    %676 = vmatpush.msra.mxu0 0.0
    %677 = vmatpush.msra.mxu0 0.0
    %678 = vmatpush.msra.mxu0 %v432
    %679 = vmatpush.msra.mxu0 %v396
    %680 = vmatmul.f32.gmra.mxu0 %v662
    %v681 = vpop.f32.mrf.mxu0
    %v682 = vadd.f32 0.0, %v681
    %683 = vdwg.mxu0
    %s684 = scalar_lea.vmem %s6, 20
    %685 = vst.msk [vmem:[%s684] sm:$0x7] %vm454, %v682
    %686 = vmatpush.msra.mxu0 0.0
    %687 = vmatpush.msra.mxu0 0.0
    %688 = vmatpush.msra.mxu0 0.0
    %689 = vmatpush.msra.mxu0 0.0
    %690 = vmatpush.msra.mxu0 0.0
    %691 = vmatpush.msra.mxu0 0.0
    %692 = vmatpush.msra.mxu0 0.0
    %693 = vmatpush.msra.mxu0 0.0
    %694 = vmatpush.msra.mxu0 0.0
    %695 = vmatpush.msra.mxu0 0.0
    %696 = vmatpush.msra.mxu0 0.0
    %697 = vmatpush.msra.mxu0 0.0
    %698 = vmatpush.msra.mxu0 0.0
    %699 = vmatpush.msra.mxu0 0.0
    %700 = vmatpush.msra.mxu0 %v405
    %701 = vmatpush.msra.mxu0 %v394
    %702 = vmatmul.f32.gmra.mxu0 %v662
    %v703 = vpop.f32.mrf.mxu0
    %v704 = vadd.f32 0.0, %v703
    %705 = vdwg.mxu0
    %v706 = vtanh.pop %v704
    %v708 = vsel %vm399, %v706, 0
    %710 = vmatpush.msra.mxu0 0.0
    %711 = vmatpush.msra.mxu0 0.0
    %712 = vmatpush.msra.mxu0 0.0
    %713 = vmatpush.msra.mxu0 0.0
    %714 = vmatpush.msra.mxu0 0.0
    %715 = vmatpush.msra.mxu0 0.0
    %716 = vmatpush.msra.mxu0 0.0
    %717 = vmatpush.msra.mxu0 0.0
    %718 = vmatpush.msra.mxu0 0.0
    %719 = vmatpush.msra.mxu0 0.0
    %720 = vmatpush.msra.mxu0 0.0
    %721 = vmatpush.msra.mxu0 0.0
    %722 = vmatpush.msra.mxu0 0.0
    %723 = vmatpush.msra.mxu0 0.0
    %724 = vmatpush.msra.mxu0 %v432
    %725 = vmatpush.msra.mxu0 %v396
    %726 = vmatmul.f32.gmra.mxu0 %v708
    %v727 = vpop.f32.mrf.mxu0
    %v728 = vadd.f32 0.0, %v727
    %729 = vdwg.mxu0
    %s730 = scalar_lea.vmem %s6, 24
    %731 = vst.msk [vmem:[%s730] sm:$0x7] %vm454, %v728
    // Predicated region
    $region26: #{tpu_custom_call.1} parent=1 // pred_check
      _
    $region27: #{tpu_custom_call.1} parent=1 // pred_check_branch
      %733 = sbr.rel (0) target = $region29
    $region28: #{tpu_custom_call.1} parent=1 // pred_region
      _
    $region29: #{tpu_custom_call.1} parent=1 // pred_fallthru
      _
    // Predicated region
    $region30: #{tpu_custom_call.1} parent=1 // pred_check
      _
    $region31: #{tpu_custom_call.1} parent=1 // pred_check_branch
      %735 = sbr.rel (0) target = $region33
    $region32: #{tpu_custom_call.1} parent=1 // pred_region
      %737 = vsyncadd [#allocation3], 0
      %s739 = sshll.u32 [#allocation2], 4
      %s740 = int_to_ptr.vmem [resolvable:$true] %s739
      %s741 = sshll.u32 %s7, 4
      %s742 = int_to_ptr.hbm [resolvable:$true] %s741
      %744 = dma.vmem_to_hbm [thread:$0]  %s740, 64, %s742, [#allocation3]
    $region33: #{tpu_custom_call.1} parent=1 // pred_fallthru
      _
    // Predicated region
    $region34: #{tpu_custom_call.1} parent=1 // pred_check
      _
    $region35: #{tpu_custom_call.1} parent=1 // pred_check_branch
      %746 = sbr.rel (0) target = $region37
    $region36: #{tpu_custom_call.1} parent=1 // pred_region
      _
    $region37: #{tpu_custom_call.1} parent=1 // pred_fallthru
      _
    // Predicated region
    $region38: #{tpu_custom_call.1} parent=1 // pred_check
      _
    $region39: #{tpu_custom_call.1} parent=1 // pred_check_branch
      %748 = sbr.rel (0) target = $region41
    $region40: #{tpu_custom_call.1} parent=1 // pred_region
      %750 = dma.done [#allocation3], 64
    $region41: #{tpu_custom_call.1} parent=1 // pred_fallthru
      _
    %751 = vsyncpa [#allocation3], 1

</llo_original>
